<compile_context>
chip_gen: v6e
topology: v6e:2x2x1
jax: 0.10.0
libtpu: 0.0.40
codegen_flags: <defaults>
</compile_context>

<pallas_src>
import functools

import jax
import jax.numpy as jnp
from jax import lax
from jax.experimental import pallas as pl
from jax.experimental.pallas import tpu as pltpu
import numpy as np


def lstm_fc_kernel(x_ref, w_ih_ref, b_ref, w_hh_ref, w_fc_ref, b_fc_ref,
                   out_ref, gx_ref, *, seq_len, batch_pad, hidden):
    """Fused LSTM forward (input projection + recurrence) + final Linear.

    x_ref    : (T*BP, D)   f32  time-major input, batch padded to BP (multiple of 8)
    w_ih_ref : (D, 4H)     f32  input->gate weights, gate order [i,f,o,g], i/f/o pre-scaled by 0.5
    b_ref    : (1, 4H)     f32  b_ih + b_hh, same reorder/scale
    w_hh_ref : (H, 4H)     f32  hidden->gate weights, same reorder/scale
    w_fc_ref : (H, O)      f32  fc weights (pre-transposed)
    b_fc_ref : (1, O)      f32  fc bias
    out_ref  : (BP, O)     f32  fc(h_T)
    gx_ref   : (T*BP, 4H)  f32  VMEM scratch holding the precomputed input projection
    """
    T, BP, H = seq_len, batch_pad, hidden

    # ---- Input projection + bias for ALL timesteps: one parallel matmul, stays in VMEM ----
    gx_ref[...] = (
        jnp.dot(x_ref[...], w_ih_ref[...], preferred_element_type=jnp.float32)
        + b_ref[...]
    )

    w_hh = w_hh_ref[...]  # (H, 4H) — loaded once, resident for the whole recurrence

    def step(t, carry):
        h, c = carry
        row = pl.multiple_of(t * BP, BP)  # BP is a multiple of 8 -> aligned sublane slice
        # Single matmul on the serial critical path (f32 operands, f32 accumulation).
        gates = gx_ref[pl.ds(row, BP), :] + jnp.dot(
            h, w_hh, preferred_element_type=jnp.float32)       # (BP, 4H), order [i,f,o,g]
        # One EUP tanh over the whole gate block. i/f/o pre-activations were pre-scaled by
        # 0.5, so sigmoid(z) = 0.5*tanh(z/2) + 0.5 is just a VPU scale/shift of the result.
        t_all = jnp.tanh(gates)
        sig = 0.5 * t_all + 0.5            # valid for the (pre-scaled) i/f/o columns
        i_g = sig[:, 0 * H:1 * H]
        f_g = sig[:, 1 * H:2 * H]
        o_g = sig[:, 2 * H:3 * H]
        g_g = t_all[:, 3 * H:4 * H]        # cell candidate: plain tanh (unscaled column)
        c_new = f_g * c + i_g * g_g
        h_new = o_g * jnp.tanh(c_new)
        return (h_new, c_new)

    h0 = jnp.zeros((BP, H), jnp.float32)
    c0 = jnp.zeros((BP, H), jnp.float32)
    # Cap the unroll: the h/c dependency serializes steps, so unrolling past ~8 only
    # inflates instruction count / vreg pressure.
    h_T, _ = lax.fori_loop(0, T, step, (h0, c0), unroll=min(T, 8))

    out_ref[...] = (
        jnp.dot(h_T, w_fc_ref[...], preferred_element_type=jnp.float32)
        + b_fc_ref[...]
    )


def _reorder_scale_gate_cols(w_t, H):
    """(K, 4H) columns in PyTorch gate order [i,f,g,o] -> order [i,f,o,g], i/f/o scaled by 0.5."""
    K = w_t.shape[0]
    w4 = w_t.reshape(K, 4, H)[:, jnp.array([0, 1, 3, 2]), :]
    scale = jnp.array([0.5, 0.5, 0.5, 1.0], w_t.dtype).reshape(1, 4, 1)
    return (w4 * scale).reshape(K, 4 * H)


def correction_model_forward(x, params):
    """x: (B, T, input_size) float32 (batch_first, like the PyTorch module)."""
    w_ih, w_hh, b_ih, b_hh, w_fc, b_fc = (
        params["w_ih"], params["w_hh"], params["b_ih"],
        params["b_hh"], params["w_fc"], params["b_fc"],
    )
    B, T, D = x.shape
    H = w_hh.shape[1]
    O = w_fc.shape[0]
    BP = int(np.ceil(B / 8)) * 8  # pad batch to a full sublane group (aligned pl.ds slices)

    # ---- weight prep (once, outside the sequential kernel) ----
    w_ih_t = _reorder_scale_gate_cols(jnp.transpose(w_ih).astype(jnp.float32), H)  # (D, 4H)
    w_hh_t = _reorder_scale_gate_cols(jnp.transpose(w_hh).astype(jnp.float32), H)  # (H, 4H)
    b4 = (b_ih + b_hh).astype(jnp.float32).reshape(4, H)[jnp.array([0, 1, 3, 2])]
    b4 = b4 * jnp.array([0.5, 0.5, 0.5, 1.0], jnp.float32)[:, None]
    b_comb = b4.reshape(1, 4 * H)                                                  # (1, 4H)
    w_fc_t = jnp.transpose(w_fc).astype(jnp.float32)                               # (H, O)
    b_fc_r = b_fc.reshape(1, O).astype(jnp.float32)                                # (1, O)

    # ---- time-major, batch padded to BP, flattened for the in-kernel input projection ----
    x_tm = jnp.transpose(x.astype(jnp.float32), (1, 0, 2))   # (T, B, D)
    x_tm = jnp.pad(x_tm, ((0, 0), (0, BP - B), (0, 0)))      # (T, BP, D); padded rows discarded
    x_flat = x_tm.reshape(T * BP, D)

    kernel = functools.partial(lstm_fc_kernel, seq_len=T, batch_pad=BP, hidden=H)
    vmem = pl.BlockSpec(memory_space=pltpu.MemorySpace.VMEM)
    out = pl.pallas_call(
        kernel,
        out_shape=jax.ShapeDtypeStruct((BP, O), jnp.float32),
        in_specs=[vmem] * 6,
        out_specs=vmem,
        scratch_shapes=[pltpu.VMEM((T * BP, 4 * H), jnp.float32)],
    )(x_flat, w_ih_t, b_comb, w_hh_t, w_fc_t, b_fc_r)
    return out[:B]


def reference_forward(x, params):
    """Pure-JAX f32 reference mirroring torch.nn.LSTM(batch_first=True) + nn.Linear."""
    w_ih, w_hh, b_ih, b_hh, w_fc, b_fc = (
        params["w_ih"], params["w_hh"], params["b_ih"],
        params["b_hh"], params["w_fc"], params["b_fc"],
    )
    B, T, _ = x.shape
    H = w_hh.shape[1]
    h = jnp.zeros((B, H), jnp.float32)
    c = jnp.zeros((B, H), jnp.float32)
    for t in range(T):
        gates = x[:, t, :] @ w_ih.T + b_ih + h @ w_hh.T + b_hh
        i = jax.nn.sigmoid(gates[:, 0 * H:1 * H])
        f = jax.nn.sigmoid(gates[:, 1 * H:2 * H])
        g = jnp.tanh(gates[:, 2 * H:3 * H])
        o = jax.nn.sigmoid(gates[:, 3 * H:4 * H])
        c = f * c + i * g
        h = o * jnp.tanh(c)
    return h @ w_fc.T + b_fc


def init_params(key, input_size=8, hidden_size=64, output_size=2):
    # Deterministic init, matching PyTorch's U(-1/sqrt(H), 1/sqrt(H)) convention.
    ks = jax.random.split(key, 6)
    stdv = 1.0 / np.sqrt(hidden_size)
    u = lambda k, shape: jax.random.uniform(k, shape, jnp.float32, -stdv, stdv)
    return {
        "w_ih": u(ks[0], (4 * hidden_size, input_size)),
        "w_hh": u(ks[1], (4 * hidden_size, hidden_size)),
        "b_ih": u(ks[2], (4 * hidden_size,)),
        "b_hh": u(ks[3], (4 * hidden_size,)),
        "w_fc": u(ks[4], (output_size, hidden_size)),
        "b_fc": u(ks[5], (output_size,)),
    }


if __name__ == "__main__":
    key = jax.random.PRNGKey(0)
    k_x, k_p = jax.random.split(key)

    B, T, D_in, H, O = 2, 8, 8, 64, 2
    x = jax.random.normal(k_x, (B, T, D_in), dtype=jnp.float32)
    params = init_params(k_p, input_size=D_in, hidden_size=H, output_size=O)

    out = correction_model_forward(x, params)
    out = jax.block_until_ready(out)

    ref = reference_forward(x, params)
    # Full-f32 path; tolerance kept loose only to absorb MXU pass/accumulation-order effects.
    np.testing.assert_allclose(np.asarray(out), np.asarray(ref), rtol=1e-2, atol=1e-2)

    print("KERNEL_OK")
</pallas_src>

<mosaic_0001>
module attributes {stable_mosaic.version = 11 : i64} {
  func.func @lstm_fc_kernel(%arg0: memref<64x8xf32, #tpu.memory_space<vmem>>, %arg1: memref<8x256xf32, #tpu.memory_space<vmem>>, %arg2: memref<1x256xf32, #tpu.memory_space<vmem>>, %arg3: memref<64x256xf32, #tpu.memory_space<vmem>>, %arg4: memref<64x2xf32, #tpu.memory_space<vmem>>, %arg5: memref<1x2xf32, #tpu.memory_space<vmem>>, %arg6: memref<8x2xf32, #tpu.memory_space<vmem>>, %arg7: memref<64x256xf32, #tpu.memory_space<vmem>>) attributes {dimension_semantics = [], scalar_prefetch = 0 : i64, scratch_operands = 1 : i64, tpu.core_type = #tpu.core_type<tc>} {
    %c0 = arith.constant 0 : index
    %c0_0 = arith.constant 0 : index
    %0 = vector.load %arg0[%c0, %c0_0] : memref<64x8xf32, #tpu.memory_space<vmem>>, vector<64x8xf32>
    %c0_1 = arith.constant 0 : index
    %c0_2 = arith.constant 0 : index
    %1 = vector.load %arg1[%c0_1, %c0_2] : memref<8x256xf32, #tpu.memory_space<vmem>>, vector<8x256xf32>
    %cst = arith.constant dense<0.000000e+00> : vector<64x256xf32>
    %2 = tpu.matmul %0, %1, %cst {dimension_numbers = #tpu.dot_dimension_numbers<[1], [0], [0], [1], [0, 0, 1, 1], [], []>} : vector<64x8xf32>, vector<8x256xf32>, vector<64x256xf32> -> vector<64x256xf32>
    %c0_3 = arith.constant 0 : index
    %c0_4 = arith.constant 0 : index
    %3 = vector.load %arg2[%c0_3, %c0_4] : memref<1x256xf32, #tpu.memory_space<vmem>>, vector<1x256xf32>
    %4 = vector.broadcast %3 : vector<1x256xf32> to vector<64x256xf32>
    %5 = arith.addf %2, %4 : vector<64x256xf32>
    %c0_5 = arith.constant 0 : index
    %c0_6 = arith.constant 0 : index
    %6 = vector.load %arg7[%c0_5, %c0_6] : memref<64x256xf32, #tpu.memory_space<vmem>>, vector<64x256xf32>
    tpu.vector_store %arg7[%c0_5, %c0_6], %5 {strides = array<i32>} : memref<64x256xf32, #tpu.memory_space<vmem>>, vector<64x256xf32>,
    %c0_7 = arith.constant 0 : index
    %c0_8 = arith.constant 0 : index
    %7 = vector.load %arg3[%c0_7, %c0_8] : memref<64x256xf32, #tpu.memory_space<vmem>>, vector<64x256xf32>
    %cst_9 = arith.constant 0.000000e+00 : f32
    %8 = vector.broadcast %cst_9 : f32 to vector<8x64xf32>
    %cst_10 = arith.constant 0.000000e+00 : f32
    %9 = vector.broadcast %cst_10 : f32 to vector<8x64xf32>
    %c0_i32 = arith.constant 0 : i32
    %c8_i32 = arith.constant 8 : i32
    %10 = arith.muli %c0_i32, %c8_i32 : i32
    %11 = tpu.assume_multiple %10, 8 : i32
    %12 = arith.index_cast %11 : i32 to index
    %c0_11 = arith.constant 0 : index
    %13 = vector.load %arg7[%12, %c0_11] : memref<64x256xf32, #tpu.memory_space<vmem>>, vector<8x256xf32>
    %cst_12 = arith.constant dense<0.000000e+00> : vector<8x256xf32>
    %14 = tpu.matmul %8, %7, %cst_12 {dimension_numbers = #tpu.dot_dimension_numbers<[1], [0], [0], [1], [0, 0, 1, 1], [], []>} : vector<8x64xf32>, vector<64x256xf32>, vector<8x256xf32> -> vector<8x256xf32>
    %15 = arith.addf %13, %14 : vector<8x256xf32>
    %16 = math.tanh %15 : vector<8x256xf32>
    %cst_13 = arith.constant 5.000000e-01 : f32
    %17 = vector.broadcast %cst_13 : f32 to vector<8x256xf32>
    %18 = arith.mulf %17, %16 : vector<8x256xf32>
    %cst_14 = arith.constant 5.000000e-01 : f32
    %19 = vector.broadcast %cst_14 : f32 to vector<8x256xf32>
    %20 = arith.addf %18, %19 : vector<8x256xf32>
    %21 = vector.extract_strided_slice %20 {offsets = [0, 0], sizes = [8, 64], strides = [1, 1]} : vector<8x256xf32> to vector<8x64xf32>
    %22 = vector.extract_strided_slice %20 {offsets = [0, 64], sizes = [8, 64], strides = [1, 1]} : vector<8x256xf32> to vector<8x64xf32>
    %23 = vector.extract_strided_slice %20 {offsets = [0, 128], sizes = [8, 64], strides = [1, 1]} : vector<8x256xf32> to vector<8x64xf32>
    %24 = vector.extract_strided_slice %16 {offsets = [0, 192], sizes = [8, 64], strides = [1, 1]} : vector<8x256xf32> to vector<8x64xf32>
    %25 = arith.mulf %22, %9 : vector<8x64xf32>
    %26 = arith.mulf %21, %24 : vector<8x64xf32>
    %27 = arith.addf %25, %26 : vector<8x64xf32>
    %28 = math.tanh %27 : vector<8x64xf32>
    %29 = arith.mulf %23, %28 : vector<8x64xf32>
    %c1_i32 = arith.constant 1 : i32
    %c8_i32_15 = arith.constant 8 : i32
    %30 = arith.muli %c1_i32, %c8_i32_15 : i32
    %31 = tpu.assume_multiple %30, 8 : i32
    %32 = arith.index_cast %31 : i32 to index
    %c0_16 = arith.constant 0 : index
    %33 = vector.load %arg7[%32, %c0_16] : memref<64x256xf32, #tpu.memory_space<vmem>>, vector<8x256xf32>
    %cst_17 = arith.constant dense<0.000000e+00> : vector<8x256xf32>
    %34 = tpu.matmul %29, %7, %cst_17 {dimension_numbers = #tpu.dot_dimension_numbers<[1], [0], [0], [1], [0, 0, 1, 1], [], []>} : vector<8x64xf32>, vector<64x256xf32>, vector<8x256xf32> -> vector<8x256xf32>
    %35 = arith.addf %33, %34 : vector<8x256xf32>
    %36 = math.tanh %35 : vector<8x256xf32>
    %cst_18 = arith.constant 5.000000e-01 : f32
    %37 = vector.broadcast %cst_18 : f32 to vector<8x256xf32>
    %38 = arith.mulf %37, %36 : vector<8x256xf32>
    %cst_19 = arith.constant 5.000000e-01 : f32
    %39 = vector.broadcast %cst_19 : f32 to vector<8x256xf32>
    %40 = arith.addf %38, %39 : vector<8x256xf32>
    %41 = vector.extract_strided_slice %40 {offsets = [0, 0], sizes = [8, 64], strides = [1, 1]} : vector<8x256xf32> to vector<8x64xf32>
    %42 = vector.extract_strided_slice %40 {offsets = [0, 64], sizes = [8, 64], strides = [1, 1]} : vector<8x256xf32> to vector<8x64xf32>
    %43 = vector.extract_strided_slice %40 {offsets = [0, 128], sizes = [8, 64], strides = [1, 1]} : vector<8x256xf32> to vector<8x64xf32>
    %44 = vector.extract_strided_slice %36 {offsets = [0, 192], sizes = [8, 64], strides = [1, 1]} : vector<8x256xf32> to vector<8x64xf32>
    %45 = arith.mulf %42, %27 : vector<8x64xf32>
    %46 = arith.mulf %41, %44 : vector<8x64xf32>
    %47 = arith.addf %45, %46 : vector<8x64xf32>
    %48 = math.tanh %47 : vector<8x64xf32>
    %49 = arith.mulf %43, %48 : vector<8x64xf32>
    %c2_i32 = arith.constant 2 : i32
    %c8_i32_20 = arith.constant 8 : i32
    %50 = arith.muli %c2_i32, %c8_i32_20 : i32
    %51 = tpu.assume_multiple %50, 8 : i32
    %52 = arith.index_cast %51 : i32 to index
    %c0_21 = arith.constant 0 : index
    %53 = vector.load %arg7[%52, %c0_21] : memref<64x256xf32, #tpu.memory_space<vmem>>, vector<8x256xf32>
    %cst_22 = arith.constant dense<0.000000e+00> : vector<8x256xf32>
    %54 = tpu.matmul %49, %7, %cst_22 {dimension_numbers = #tpu.dot_dimension_numbers<[1], [0], [0], [1], [0, 0, 1, 1], [], []>} : vector<8x64xf32>, vector<64x256xf32>, vector<8x256xf32> -> vector<8x256xf32>
    %55 = arith.addf %53, %54 : vector<8x256xf32>
    %56 = math.tanh %55 : vector<8x256xf32>
    %cst_23 = arith.constant 5.000000e-01 : f32
    %57 = vector.broadcast %cst_23 : f32 to vector<8x256xf32>
    %58 = arith.mulf %57, %56 : vector<8x256xf32>
    %cst_24 = arith.constant 5.000000e-01 : f32
    %59 = vector.broadcast %cst_24 : f32 to vector<8x256xf32>
    %60 = arith.addf %58, %59 : vector<8x256xf32>
    %61 = vector.extract_strided_slice %60 {offsets = [0, 0], sizes = [8, 64], strides = [1, 1]} : vector<8x256xf32> to vector<8x64xf32>
    %62 = vector.extract_strided_slice %60 {offsets = [0, 64], sizes = [8, 64], strides = [1, 1]} : vector<8x256xf32> to vector<8x64xf32>
    %63 = vector.extract_strided_slice %60 {offsets = [0, 128], sizes = [8, 64], strides = [1, 1]} : vector<8x256xf32> to vector<8x64xf32>
    %64 = vector.extract_strided_slice %56 {offsets = [0, 192], sizes = [8, 64], strides = [1, 1]} : vector<8x256xf32> to vector<8x64xf32>
    %65 = arith.mulf %62, %47 : vector<8x64xf32>
    %66 = arith.mulf %61, %64 : vector<8x64xf32>
    %67 = arith.addf %65, %66 : vector<8x64xf32>
    %68 = math.tanh %67 : vector<8x64xf32>
    %69 = arith.mulf %63, %68 : vector<8x64xf32>
    %c3_i32 = arith.constant 3 : i32
    %c8_i32_25 = arith.constant 8 : i32
    %70 = arith.muli %c3_i32, %c8_i32_25 : i32
    %71 = tpu.assume_multiple %70, 8 : i32
    %72 = arith.index_cast %71 : i32 to index
    %c0_26 = arith.constant 0 : index
    %73 = vector.load %arg7[%72, %c0_26] : memref<64x256xf32, #tpu.memory_space<vmem>>, vector<8x256xf32>
    %cst_27 = arith.constant dense<0.000000e+00> : vector<8x256xf32>
    %74 = tpu.matmul %69, %7, %cst_27 {dimension_numbers = #tpu.dot_dimension_numbers<[1], [0], [0], [1], [0, 0, 1, 1], [], []>} : vector<8x64xf32>, vector<64x256xf32>, vector<8x256xf32> -> vector<8x256xf32>
    %75 = arith.addf %73, %74 : vector<8x256xf32>
    %76 = math.tanh %75 : vector<8x256xf32>
    %cst_28 = arith.constant 5.000000e-01 : f32
    %77 = vector.broadcast %cst_28 : f32 to vector<8x256xf32>
    %78 = arith.mulf %77, %76 : vector<8x256xf32>
    %cst_29 = arith.constant 5.000000e-01 : f32
    %79 = vector.broadcast %cst_29 : f32 to vector<8x256xf32>
    %80 = arith.addf %78, %79 : vector<8x256xf32>
    %81 = vector.extract_strided_slice %80 {offsets = [0, 0], sizes = [8, 64], strides = [1, 1]} : vector<8x256xf32> to vector<8x64xf32>
    %82 = vector.extract_strided_slice %80 {offsets = [0, 64], sizes = [8, 64], strides = [1, 1]} : vector<8x256xf32> to vector<8x64xf32>
    %83 = vector.extract_strided_slice %80 {offsets = [0, 128], sizes = [8, 64], strides = [1, 1]} : vector<8x256xf32> to vector<8x64xf32>
    %84 = vector.extract_strided_slice %76 {offsets = [0, 192], sizes = [8, 64], strides = [1, 1]} : vector<8x256xf32> to vector<8x64xf32>
    %85 = arith.mulf %82, %67 : vector<8x64xf32>
    %86 = arith.mulf %81, %84 : vector<8x64xf32>
    %87 = arith.addf %85, %86 : vector<8x64xf32>
    %88 = math.tanh %87 : vector<8x64xf32>
    %89 = arith.mulf %83, %88 : vector<8x64xf32>
    %c4_i32 = arith.constant 4 : i32
    %c8_i32_30 = arith.constant 8 : i32
    %90 = arith.muli %c4_i32, %c8_i32_30 : i32
    %91 = tpu.assume_multiple %90, 8 : i32
    %92 = arith.index_cast %91 : i32 to index
    %c0_31 = arith.constant 0 : index
    %93 = vector.load %arg7[%92, %c0_31] : memref<64x256xf32, #tpu.memory_space<vmem>>, vector<8x256xf32>
    %cst_32 = arith.constant dense<0.000000e+00> : vector<8x256xf32>
    %94 = tpu.matmul %89, %7, %cst_32 {dimension_numbers = #tpu.dot_dimension_numbers<[1], [0], [0], [1], [0, 0, 1, 1], [], []>} : vector<8x64xf32>, vector<64x256xf32>, vector<8x256xf32> -> vector<8x256xf32>
    %95 = arith.addf %93, %94 : vector<8x256xf32>
    %96 = math.tanh %95 : vector<8x256xf32>
    %cst_33 = arith.constant 5.000000e-01 : f32
    %97 = vector.broadcast %cst_33 : f32 to vector<8x256xf32>
    %98 = arith.mulf %97, %96 : vector<8x256xf32>
    %cst_34 = arith.constant 5.000000e-01 : f32
    %99 = vector.broadcast %cst_34 : f32 to vector<8x256xf32>
    %100 = arith.addf %98, %99 : vector<8x256xf32>
    %101 = vector.extract_strided_slice %100 {offsets = [0, 0], sizes = [8, 64], strides = [1, 1]} : vector<8x256xf32> to vector<8x64xf32>
    %102 = vector.extract_strided_slice %100 {offsets = [0, 64], sizes = [8, 64], strides = [1, 1]} : vector<8x256xf32> to vector<8x64xf32>
    %103 = vector.extract_strided_slice %100 {offsets = [0, 128], sizes = [8, 64], strides = [1, 1]} : vector<8x256xf32> to vector<8x64xf32>
    %104 = vector.extract_strided_slice %96 {offsets = [0, 192], sizes = [8, 64], strides = [1, 1]} : vector<8x256xf32> to vector<8x64xf32>
    %105 = arith.mulf %102, %87 : vector<8x64xf32>
    %106 = arith.mulf %101, %104 : vector<8x64xf32>
    %107 = arith.addf %105, %106 : vector<8x64xf32>
    %108 = math.tanh %107 : vector<8x64xf32>
    %109 = arith.mulf %103, %108 : vector<8x64xf32>
    %c5_i32 = arith.constant 5 : i32
    %c8_i32_35 = arith.constant 8 : i32
    %110 = arith.muli %c5_i32, %c8_i32_35 : i32
    %111 = tpu.assume_multiple %110, 8 : i32
    %112 = arith.index_cast %111 : i32 to index
    %c0_36 = arith.constant 0 : index
    %113 = vector.load %arg7[%112, %c0_36] : memref<64x256xf32, #tpu.memory_space<vmem>>, vector<8x256xf32>
    %cst_37 = arith.constant dense<0.000000e+00> : vector<8x256xf32>
    %114 = tpu.matmul %109, %7, %cst_37 {dimension_numbers = #tpu.dot_dimension_numbers<[1], [0], [0], [1], [0, 0, 1, 1], [], []>} : vector<8x64xf32>, vector<64x256xf32>, vector<8x256xf32> -> vector<8x256xf32>
    %115 = arith.addf %113, %114 : vector<8x256xf32>
    %116 = math.tanh %115 : vector<8x256xf32>
    %cst_38 = arith.constant 5.000000e-01 : f32
    %117 = vector.broadcast %cst_38 : f32 to vector<8x256xf32>
    %118 = arith.mulf %117, %116 : vector<8x256xf32>
    %cst_39 = arith.constant 5.000000e-01 : f32
    %119 = vector.broadcast %cst_39 : f32 to vector<8x256xf32>
    %120 = arith.addf %118, %119 : vector<8x256xf32>
    %121 = vector.extract_strided_slice %120 {offsets = [0, 0], sizes = [8, 64], strides = [1, 1]} : vector<8x256xf32> to vector<8x64xf32>
    %122 = vector.extract_strided_slice %120 {offsets = [0, 64], sizes = [8, 64], strides = [1, 1]} : vector<8x256xf32> to vector<8x64xf32>
    %123 = vector.extract_strided_slice %120 {offsets = [0, 128], sizes = [8, 64], strides = [1, 1]} : vector<8x256xf32> to vector<8x64xf32>
    %124 = vector.extract_strided_slice %116 {offsets = [0, 192], sizes = [8, 64], strides = [1, 1]} : vector<8x256xf32> to vector<8x64xf32>
    %125 = arith.mulf %122, %107 : vector<8x64xf32>
    %126 = arith.mulf %121, %124 : vector<8x64xf32>
    %127 = arith.addf %125, %126 : vector<8x64xf32>
    %128 = math.tanh %127 : vector<8x64xf32>
    %129 = arith.mulf %123, %128 : vector<8x64xf32>
    %c6_i32 = arith.constant 6 : i32
    %c8_i32_40 = arith.constant 8 : i32
    %130 = arith.muli %c6_i32, %c8_i32_40 : i32
    %131 = tpu.assume_multiple %130, 8 : i32
    %132 = arith.index_cast %131 : i32 to index
    %c0_41 = arith.constant 0 : index
    %133 = vector.load %arg7[%132, %c0_41] : memref<64x256xf32, #tpu.memory_space<vmem>>, vector<8x256xf32>
    %cst_42 = arith.constant dense<0.000000e+00> : vector<8x256xf32>
    %134 = tpu.matmul %129, %7, %cst_42 {dimension_numbers = #tpu.dot_dimension_numbers<[1], [0], [0], [1], [0, 0, 1, 1], [], []>} : vector<8x64xf32>, vector<64x256xf32>, vector<8x256xf32> -> vector<8x256xf32>
    %135 = arith.addf %133, %134 : vector<8x256xf32>
    %136 = math.tanh %135 : vector<8x256xf32>
    %cst_43 = arith.constant 5.000000e-01 : f32
    %137 = vector.broadcast %cst_43 : f32 to vector<8x256xf32>
    %138 = arith.mulf %137, %136 : vector<8x256xf32>
    %cst_44 = arith.constant 5.000000e-01 : f32
    %139 = vector.broadcast %cst_44 : f32 to vector<8x256xf32>
    %140 = arith.addf %138, %139 : vector<8x256xf32>
    %141 = vector.extract_strided_slice %140 {offsets = [0, 0], sizes = [8, 64], strides = [1, 1]} : vector<8x256xf32> to vector<8x64xf32>
    %142 = vector.extract_strided_slice %140 {offsets = [0, 64], sizes = [8, 64], strides = [1, 1]} : vector<8x256xf32> to vector<8x64xf32>
    %143 = vector.extract_strided_slice %140 {offsets = [0, 128], sizes = [8, 64], strides = [1, 1]} : vector<8x256xf32> to vector<8x64xf32>
    %144 = vector.extract_strided_slice %136 {offsets = [0, 192], sizes = [8, 64], strides = [1, 1]} : vector<8x256xf32> to vector<8x64xf32>
    %145 = arith.mulf %142, %127 : vector<8x64xf32>
    %146 = arith.mulf %141, %144 : vector<8x64xf32>
    %147 = arith.addf %145, %146 : vector<8x64xf32>
    %148 = math.tanh %147 : vector<8x64xf32>
    %149 = arith.mulf %143, %148 : vector<8x64xf32>
    %c7_i32 = arith.constant 7 : i32
    %c8_i32_45 = arith.constant 8 : i32
    %150 = arith.muli %c7_i32, %c8_i32_45 : i32
    %151 = tpu.assume_multiple %150, 8 : i32
    %152 = arith.index_cast %151 : i32 to index
    %c0_46 = arith.constant 0 : index
    %153 = vector.load %arg7[%152, %c0_46] : memref<64x256xf32, #tpu.memory_space<vmem>>, vector<8x256xf32>
    %cst_47 = arith.constant dense<0.000000e+00> : vector<8x256xf32>
    %154 = tpu.matmul %149, %7, %cst_47 {dimension_numbers = #tpu.dot_dimension_numbers<[1], [0], [0], [1], [0, 0, 1, 1], [], []>} : vector<8x64xf32>, vector<64x256xf32>, vector<8x256xf32> -> vector<8x256xf32>
    %155 = arith.addf %153, %154 : vector<8x256xf32>
    %156 = math.tanh %155 : vector<8x256xf32>
    %cst_48 = arith.constant 5.000000e-01 : f32
    %157 = vector.broadcast %cst_48 : f32 to vector<8x256xf32>
    %158 = arith.mulf %157, %156 : vector<8x256xf32>
    %cst_49 = arith.constant 5.000000e-01 : f32
    %159 = vector.broadcast %cst_49 : f32 to vector<8x256xf32>
    %160 = arith.addf %158, %159 : vector<8x256xf32>
    %161 = vector.extract_strided_slice %160 {offsets = [0, 0], sizes = [8, 64], strides = [1, 1]} : vector<8x256xf32> to vector<8x64xf32>
    %162 = vector.extract_strided_slice %160 {offsets = [0, 64], sizes = [8, 64], strides = [1, 1]} : vector<8x256xf32> to vector<8x64xf32>
    %163 = vector.extract_strided_slice %160 {offsets = [0, 128], sizes = [8, 64], strides = [1, 1]} : vector<8x256xf32> to vector<8x64xf32>
    %164 = vector.extract_strided_slice %156 {offsets = [0, 192], sizes = [8, 64], strides = [1, 1]} : vector<8x256xf32> to vector<8x64xf32>
    %165 = arith.mulf %162, %147 : vector<8x64xf32>
    %166 = arith.mulf %161, %164 : vector<8x64xf32>
    %167 = arith.addf %165, %166 : vector<8x64xf32>
    %168 = math.tanh %167 : vector<8x64xf32>
    %169 = arith.mulf %163, %168 : vector<8x64xf32>
    %c8_i32_50 = arith.constant 8 : i32
    %c0_51 = arith.constant 0 : index
    %c0_52 = arith.constant 0 : index
    %170 = vector.load %arg4[%c0_51, %c0_52] : memref<64x2xf32, #tpu.memory_space<vmem>>, vector<64x2xf32>
    %cst_53 = arith.constant dense<0.000000e+00> : vector<8x2xf32>
    %171 = tpu.matmul %169, %170, %cst_53 {dimension_numbers = #tpu.dot_dimension_numbers<[1], [0], [0], [1], [0, 0, 1, 1], [], []>} : vector<8x64xf32>, vector<64x2xf32>, vector<8x2xf32> -> vector<8x2xf32>
    %c0_54 = arith.constant 0 : index
    %c0_55 = arith.constant 0 : index
    %172 = vector.load %arg5[%c0_54, %c0_55] : memref<1x2xf32, #tpu.memory_space<vmem>>, vector<1x2xf32>
    %173 = vector.broadcast %172 : vector<1x2xf32> to vector<8x2xf32>
    %174 = arith.addf %171, %173 : vector<8x2xf32>
    %c0_56 = arith.constant 0 : index
    %c0_57 = arith.constant 0 : index
    %175 = vector.load %arg6[%c0_56, %c0_57] : memref<8x2xf32, #tpu.memory_space<vmem>>, vector<8x2xf32>
    tpu.vector_store %arg6[%c0_56, %c0_57], %174 {strides = array<i32>} : memref<8x2xf32, #tpu.memory_space<vmem>>, vector<8x2xf32>,
    return
  }
}

</mosaic_0001>

<llo_original>
// kernel: tpu_custom_call.1
$region0: #{tpu_custom_call.1}
  #allocation0 [shape = 'u32[]', space=smem, size = 0x4, offset = 0x4, fixed_abs, tag = 'smem constant byte address 0x4 - core index']
  #allocation1 [shape = 'u32[144,128]{1,0:T(1,128)}', space=vmem, size = 0x12000, scoped, tag = 'internal scratch']
  #allocation2 [shape = 'f32[64,256]{1,0:T(8,128)}', space=vmem, size = 0x10000, scoped, tag = 'scratch operand']
  %s0 = inlined_call_operand.vmem [shape: f32[64,8], index: 0, kind: input, shape index: {}]
  %s1 = inlined_call_operand.hbm [shape: f32[8,256], index: 1, kind: input, shape index: {}]
  %s2 = inlined_call_operand.vmem [shape: f32[1,256], index: 2, kind: input, shape index: {}]
  %s3 = inlined_call_operand.vmem [shape: f32[64,256], index: 3, kind: input, shape index: {}]
  %s4 = inlined_call_operand.vmem [shape: f32[64,2], index: 4, kind: input, shape index: {}]
  %s5 = inlined_call_operand.vmem [shape: f32[1,2], index: 5, kind: input, shape index: {}]
  %s6 = inlined_call_operand.vmem [shape: f32[8,2], index: 6, kind: output, shape index: {}]
  %s7 = sld [smem:[#allocation0]]
  $region38: #{tpu_custom_call.1} parent=0
    _
  %s9 = ssub.s32 1, %s7
  %s10 = scalar_select 0, %s9, %s7
  $region1: #{tpu_custom_call.1} parent=0
    #allocation3 [shape = 'u8[8192]{0}', space=vmem, size = 0x2000, scoped, tag = 'input window, operand 1, single buffered']
    #allocation4 [shape = 's32[1]{0}', space=sflag, size = 0x4, scoped, tag = 'scoped memory for tpu_custom_call.1']
    %11 = vsyncpa [#allocation4], 0
    // Predicated region
    $region2: #{tpu_custom_call.1} parent=1 // pred_check
      _
    $region3: #{tpu_custom_call.1} parent=1 // pred_check_branch
      %13 = sbr.rel (0) target = $region5
    $region4: #{tpu_custom_call.1} parent=1 // pred_region
      _
    $region5: #{tpu_custom_call.1} parent=1 // pred_fallthru
      _
    // Predicated region
    $region6: #{tpu_custom_call.1} parent=1 // pred_check
      _
    $region7: #{tpu_custom_call.1} parent=1 // pred_check_branch
      %15 = sbr.rel (0) target = $region9
    $region8: #{tpu_custom_call.1} parent=1 // pred_region
      %s17 = ssub.s32 256, 256
      %18 = vsyncadd [#allocation4], %s17
      %s20 = sshll.u32 [#allocation3], 4
      %s21 = int_to_ptr.vmem [resolvable:$true] %s20
      %23 = dma.hbm_to_vmem [thread:$0]  %s1, 256, %s21, [#allocation4]
    $region9: #{tpu_custom_call.1} parent=1 // pred_fallthru
      _
    // Predicated region
    $region10: #{tpu_custom_call.1} parent=1 // pred_check
      _
    $region11: #{tpu_custom_call.1} parent=1 // pred_check_branch
      %25 = sbr.rel (0) target = $region13
    $region12: #{tpu_custom_call.1} parent=1 // pred_region
      _
    $region13: #{tpu_custom_call.1} parent=1 // pred_fallthru
      _
    // Predicated region
    $region14: #{tpu_custom_call.1} parent=1 // pred_check
      _
    $region15: #{tpu_custom_call.1} parent=1 // pred_check_branch
      %27 = sbr.rel (0) target = $region17
    $region16: #{tpu_custom_call.1} parent=1 // pred_region
      _
    $region17: #{tpu_custom_call.1} parent=1 // pred_fallthru
      _
    // Predicated region
    $region18: #{tpu_custom_call.1} parent=1 // pred_check
      _
    $region19: #{tpu_custom_call.1} parent=1 // pred_check_branch
      %29 = sbr.rel (0) target = $region21
    $region20: #{tpu_custom_call.1} parent=1 // pred_region
      _
    $region21: #{tpu_custom_call.1} parent=1 // pred_fallthru
      _
    // Predicated region
    $region22: #{tpu_custom_call.1} parent=1 // pred_check
      _
    $region23: #{tpu_custom_call.1} parent=1 // pred_check_branch
      %31 = sbr.rel (0) target = $region25
    $region24: #{tpu_custom_call.1} parent=1 // pred_region
      _
    $region25: #{tpu_custom_call.1} parent=1 // pred_fallthru
      _
    // Predicated region
    $region26: #{tpu_custom_call.1} parent=1 // pred_check
      _
    $region27: #{tpu_custom_call.1} parent=1 // pred_check_branch
      %33 = sbr.rel (0) target = $region29
    $region28: #{tpu_custom_call.1} parent=1 // pred_region
      %34 = dma.done [#allocation4], 256
    $region29: #{tpu_custom_call.1} parent=1 // pred_fallthru
      _
    %v35 = vld [vmem:[%s0] sm:$0xff]
    %v36 = vld [vmem:[%s0 + $0x8] sm:$0xff]
    %v37 = vld [vmem:[%s0 + $0x10] sm:$0xff]
    %v38 = vld [vmem:[%s0 + $0x18] sm:$0xff]
    %v39 = vld [vmem:[%s0 + $0x20] sm:$0xff]
    %v40 = vld [vmem:[%s0 + $0x28] sm:$0xff]
    %v41 = vld [vmem:[%s0 + $0x30] sm:$0xff]
    %v42 = vld [vmem:[%s0 + $0x38] sm:$0xff]
    %v43 = vld [vmem:[#allocation3] sm:$0xff]
    %v44 = vld [vmem:[#allocation3 + $0x8] sm:$0xff]
    %v45 = vld [vmem:[%s2] sm:$0x3]
    %v47 = vlaneseq
    %v48 = vshrl.u32 %v47, 7
    %v49 = vsub.s32 0, %v48
    %v50 = vrot.slane %v45, %v49
    %v51 = vlaneseq
    %v52 = vshrl.u32 %v51, 7
    %v53 = vsub.s32 1, %v52
    %v54 = vrot.slane %v45, %v53
    %vm57 = vcmask 64512
    %v59 = vsel %vm57, %v35, 0
    %v62 = vsel %vm57, %v36, 0
    %v65 = vsel %vm57, %v37, 0
    %v68 = vsel %vm57, %v38, 0
    %v71 = vsel %vm57, %v39, 0
    %v74 = vsel %vm57, %v40, 0
    %v77 = vsel %vm57, %v41, 0
    %v80 = vsel %vm57, %v42, 0
    %82 = vmatprep.subr.mxu0 0.0
    %83 = vmatpush1.msra.mxu0 0.0
    %84 = vmatprep.subr.mxu0 0.0
    %85 = vmatpush1.msra.mxu0 0.0
    %86 = vmatprep.subr.mxu0 0.0
    %87 = vmatpush1.msra.mxu0 0.0
    %88 = vmatprep.subr.mxu0 0.0
    %89 = vmatpush1.msra.mxu0 0.0
    %90 = vmatprep.subr.mxu0 0.0
    %91 = vmatpush1.msra.mxu0 0.0
    %92 = vmatprep.subr.mxu0 0.0
    %93 = vmatpush1.msra.mxu0 0.0
    %94 = vmatprep.subr.mxu0 0.0
    %95 = vmatpush1.msra.mxu0 0.0
    %96 = vmatprep.subr.mxu0 0.0
    %97 = vmatpush1.msra.mxu0 0.0
    %98 = vmatprep.subr.mxu0 0.0
    %99 = vmatpush1.msra.mxu0 0.0
    %100 = vmatprep.subr.mxu0 0.0
    %101 = vmatpush1.msra.mxu0 0.0
    %102 = vmatprep.subr.mxu0 0.0
    %103 = vmatpush1.msra.mxu0 0.0
    %104 = vmatprep.subr.mxu0 0.0
    %105 = vmatpush1.msra.mxu0 0.0
    %106 = vmatprep.subr.mxu0 0.0
    %107 = vmatpush1.msra.mxu0 0.0
    %108 = vmatprep.subr.mxu0 0.0
    %109 = vmatpush1.msra.mxu0 0.0
    %110 = vmatprep.subr.mxu0 0.0
    %111 = vmatpush1.msra.mxu0 0.0
    %112 = vmatprep.subr.mxu0 %v44
    %113 = vmatpush1.msra.mxu0 %v43
    %114 = vmatprep.subr.mxu0 0.0
    %115 = vmatpush2.msra.mxu0 0.0
    %116 = vmatprep.subr.mxu0 0.0
    %117 = vmatpush2.msra.mxu0 0.0
    %118 = vmatprep.subr.mxu0 0.0
    %119 = vmatpush2.msra.mxu0 0.0
    %120 = vmatprep.subr.mxu0 0.0
    %121 = vmatpush2.msra.mxu0 0.0
    %122 = vmatprep.subr.mxu0 0.0
    %123 = vmatpush2.msra.mxu0 0.0
    %124 = vmatprep.subr.mxu0 0.0
    %125 = vmatpush2.msra.mxu0 0.0
    %126 = vmatprep.subr.mxu0 0.0
    %127 = vmatpush2.msra.mxu0 0.0
    %128 = vmatprep.subr.mxu0 0.0
    %129 = vmatpush2.msra.mxu0 0.0
    %130 = vmatprep.subr.mxu0 0.0
    %131 = vmatpush2.msra.mxu0 0.0
    %132 = vmatprep.subr.mxu0 0.0
    %133 = vmatpush2.msra.mxu0 0.0
    %134 = vmatprep.subr.mxu0 0.0
    %135 = vmatpush2.msra.mxu0 0.0
    %136 = vmatprep.subr.mxu0 0.0
    %137 = vmatpush2.msra.mxu0 0.0
    %138 = vmatprep.subr.mxu0 0.0
    %139 = vmatpush2.msra.mxu0 0.0
    %140 = vmatprep.subr.mxu0 0.0
    %141 = vmatpush2.msra.mxu0 0.0
    %142 = vmatprep.subr.mxu0 0.0
    %143 = vmatpush2.msra.mxu0 0.0
    %144 = vmatprep.subr.mxu0 0.0
    %145 = vmatpush2.msra.mxu0 0.0
    %146 = vmatprep.mubr.f32.mxu0 0.0
    %147 = vmatmul.mubr.f32.gmra.mxu0 %v59
    %v148 = vpop.f32.mrf.mxu0
    %v149 = vadd.f32 %v50, %v148
    %v150 = vpop.f32.mrf.mxu0
    %v151 = vadd.f32 %v54, %v150
    %152 = vmatprep.mubr.f32.mxu0 0.0
    %153 = vmatmul.mubr.f32.gmra.mxu0 %v62
    %v154 = vpop.f32.mrf.mxu0
    %v155 = vadd.f32 %v50, %v154
    %v156 = vpop.f32.mrf.mxu0
    %v157 = vadd.f32 %v54, %v156
    %158 = vmatprep.mubr.f32.mxu0 0.0
    %159 = vmatmul.mubr.f32.gmra.mxu0 %v65
    %v160 = vpop.f32.mrf.mxu0
    %v161 = vadd.f32 %v50, %v160
    %v162 = vpop.f32.mrf.mxu0
    %v163 = vadd.f32 %v54, %v162
    %164 = vmatprep.mubr.f32.mxu0 0.0
    %165 = vmatmul.mubr.f32.gmra.mxu0 %v68
    %v166 = vpop.f32.mrf.mxu0
    %v167 = vadd.f32 %v50, %v166
    %v168 = vpop.f32.mrf.mxu0
    %v169 = vadd.f32 %v54, %v168
    %170 = vmatprep.mubr.f32.mxu0 0.0
    %171 = vmatmul.mubr.f32.gmra.mxu0 %v71
    %v172 = vpop.f32.mrf.mxu0
    %v173 = vadd.f32 %v50, %v172
    %v174 = vpop.f32.mrf.mxu0
    %v175 = vadd.f32 %v54, %v174
    %176 = vmatprep.mubr.f32.mxu0 0.0
    %177 = vmatmul.mubr.f32.gmra.mxu0 %v74
    %v178 = vpop.f32.mrf.mxu0
    %v179 = vadd.f32 %v50, %v178
    %v180 = vpop.f32.mrf.mxu0
    %v181 = vadd.f32 %v54, %v180
    %182 = vmatprep.mubr.f32.mxu0 0.0
    %183 = vmatmul.mubr.f32.gmra.mxu0 %v77
    %v184 = vpop.f32.mrf.mxu0
    %v185 = vadd.f32 %v50, %v184
    %v186 = vpop.f32.mrf.mxu0
    %v187 = vadd.f32 %v54, %v186
    %188 = vmatprep.mubr.f32.mxu0 0.0
    %189 = vmatmul.mubr.f32.gmra.mxu0 %v80
    %v190 = vpop.f32.mrf.mxu0
    %v191 = vadd.f32 %v50, %v190
    %v192 = vpop.f32.mrf.mxu0
    %v193 = vadd.f32 %v54, %v192
    %194 = vdwg.mxu0
    %195 = vst [vmem:[#allocation2] sm:$0xff] %v149
    %196 = vst [vmem:[#allocation2 + $0x8] sm:$0xff] %v151
    %197 = vst [vmem:[#allocation2 + $0x10] sm:$0xff] %v155
    %198 = vst [vmem:[#allocation2 + $0x18] sm:$0xff] %v157
    %199 = vst [vmem:[#allocation2 + $0x20] sm:$0xff] %v161
    %200 = vst [vmem:[#allocation2 + $0x28] sm:$0xff] %v163
    %201 = vst [vmem:[#allocation2 + $0x30] sm:$0xff] %v167
    %202 = vst [vmem:[#allocation2 + $0x38] sm:$0xff] %v169
    %203 = vst [vmem:[#allocation2 + $0x40] sm:$0xff] %v173
    %204 = vst [vmem:[#allocation2 + $0x48] sm:$0xff] %v175
    %205 = vst [vmem:[#allocation2 + $0x50] sm:$0xff] %v179
    %206 = vst [vmem:[#allocation2 + $0x58] sm:$0xff] %v181
    %207 = vst [vmem:[#allocation2 + $0x60] sm:$0xff] %v185
    %208 = vst [vmem:[#allocation2 + $0x68] sm:$0xff] %v187
    %209 = vst [vmem:[#allocation2 + $0x70] sm:$0xff] %v191
    %210 = vst [vmem:[#allocation2 + $0x78] sm:$0xff] %v193
    %v211 = vld [vmem:[%s3] sm:$0xff]
    %v212 = vld [vmem:[%s3 + $0x8] sm:$0xff]
    %v213 = vld [vmem:[%s3 + $0x10] sm:$0xff]
    %v214 = vld [vmem:[%s3 + $0x18] sm:$0xff]
    %v215 = vld [vmem:[%s3 + $0x20] sm:$0xff]
    %v216 = vld [vmem:[%s3 + $0x28] sm:$0xff]
    %v217 = vld [vmem:[%s3 + $0x30] sm:$0xff]
    %v218 = vld [vmem:[%s3 + $0x38] sm:$0xff]
    %v219 = vld [vmem:[%s3 + $0x40] sm:$0xff]
    %v220 = vld [vmem:[%s3 + $0x48] sm:$0xff]
    %v221 = vld [vmem:[%s3 + $0x50] sm:$0xff]
    %v222 = vld [vmem:[%s3 + $0x58] sm:$0xff]
    %v223 = vld [vmem:[%s3 + $0x60] sm:$0xff]
    %v224 = vld [vmem:[%s3 + $0x68] sm:$0xff]
    %v225 = vld [vmem:[%s3 + $0x70] sm:$0xff]
    %v226 = vld [vmem:[%s3 + $0x78] sm:$0xff]
    %s227 = smul.u32 0, 2
    %s228 = smul.addr %s227, 8
    %s229 = scalar_lea.vmem [#allocation2], %s228
    %v230 = vld [vmem:[%s229] sm:$0xff]
    %v231 = vld [vmem:[%s229 + $0x8] sm:$0xff]
    %vm232 = vcmask 523264
    %v234 = vsel %vm232, 0.0, 0
    %236 = vmatprep.subr.mxu0 0.0
    %237 = vmatpush1.msra.mxu0 0.0
    %238 = vmatprep.subr.mxu0 0.0
    %239 = vmatpush1.msra.mxu0 0.0
    %240 = vmatprep.subr.mxu0 0.0
    %241 = vmatpush1.msra.mxu0 0.0
    %242 = vmatprep.subr.mxu0 0.0
    %243 = vmatpush1.msra.mxu0 0.0
    %244 = vmatprep.subr.mxu0 0.0
    %245 = vmatpush1.msra.mxu0 0.0
    %246 = vmatprep.subr.mxu0 0.0
    %247 = vmatpush1.msra.mxu0 0.0
    %248 = vmatprep.subr.mxu0 0.0
    %249 = vmatpush1.msra.mxu0 0.0
    %250 = vmatprep.subr.mxu0 0.0
    %251 = vmatpush1.msra.mxu0 0.0
    %252 = vmatprep.subr.mxu0 %v226
    %253 = vmatpush1.msra.mxu0 %v225
    %254 = vmatprep.subr.mxu0 %v224
    %255 = vmatpush1.msra.mxu0 %v223
    %256 = vmatprep.subr.mxu0 %v222
    %257 = vmatpush1.msra.mxu0 %v221
    %258 = vmatprep.subr.mxu0 %v220
    %259 = vmatpush1.msra.mxu0 %v219
    %260 = vmatprep.subr.mxu0 %v218
    %261 = vmatpush1.msra.mxu0 %v217
    %262 = vmatprep.subr.mxu0 %v216
    %263 = vmatpush1.msra.mxu0 %v215
    %264 = vmatprep.subr.mxu0 %v214
    %265 = vmatpush1.msra.mxu0 %v213
    %266 = vmatprep.subr.mxu0 %v212
    %267 = vmatpush1.msra.mxu0 %v211
    %268 = vmatprep.subr.mxu0 0.0
    %269 = vmatpush2.msra.mxu0 0.0
    %270 = vmatprep.subr.mxu0 0.0
    %271 = vmatpush2.msra.mxu0 0.0
    %272 = vmatprep.subr.mxu0 0.0
    %273 = vmatpush2.msra.mxu0 0.0
    %274 = vmatprep.subr.mxu0 0.0
    %275 = vmatpush2.msra.mxu0 0.0
    %276 = vmatprep.subr.mxu0 0.0
    %277 = vmatpush2.msra.mxu0 0.0
    %278 = vmatprep.subr.mxu0 0.0
    %279 = vmatpush2.msra.mxu0 0.0
    %280 = vmatprep.subr.mxu0 0.0
    %281 = vmatpush2.msra.mxu0 0.0
    %282 = vmatprep.subr.mxu0 0.0
    %283 = vmatpush2.msra.mxu0 0.0
    %284 = vmatprep.subr.mxu0 0.0
    %285 = vmatpush2.msra.mxu0 0.0
    %286 = vmatprep.subr.mxu0 0.0
    %287 = vmatpush2.msra.mxu0 0.0
    %288 = vmatprep.subr.mxu0 0.0
    %289 = vmatpush2.msra.mxu0 0.0
    %290 = vmatprep.subr.mxu0 0.0
    %291 = vmatpush2.msra.mxu0 0.0
    %292 = vmatprep.subr.mxu0 0.0
    %293 = vmatpush2.msra.mxu0 0.0
    %294 = vmatprep.subr.mxu0 0.0
    %295 = vmatpush2.msra.mxu0 0.0
    %296 = vmatprep.subr.mxu0 0.0
    %297 = vmatpush2.msra.mxu0 0.0
    %298 = vmatprep.subr.mxu0 0.0
    %299 = vmatpush2.msra.mxu0 0.0
    %300 = vmatprep.mubr.f32.mxu0 0.0
    %301 = vmatmul.mubr.f32.gmra.mxu0 %v234
    %v302 = vpop.f32.mrf.mxu0
    %v303 = vadd.f32 0.0, %v302
    %v304 = vpop.f32.mrf.mxu0
    %v305 = vadd.f32 0.0, %v304
    %306 = vdwg.mxu0
    %v307 = vadd.f32 %v230, %v303
    %v308 = vadd.f32 %v231, %v305
    %v309 = vtanh.pop %v307
    %v310 = vtanh.pop %v308
    %v311 = vmul.f32 %v309, 0.5
    %v312 = vmul.f32 %v310, 0.5
    %v313 = vadd.f32 %v311, 0.5
    %v314 = vadd.f32 %v312, 0.5
    %v315 = vmul.f32 %v313, 0.0
    %317 = vrot.lane.b32.xlu0 %v310, 64
    %v318 = vpop.permute.xlu0 %317
    %v320 = vmul.f32 %v313, %v318
    %322 = vrot.lane.b32.xlu0 %v320, 64
    %v323 = vpop.permute.xlu0 %322
    %v325 = vadd.f32 %v315, %v323
    %v326 = vtanh.pop %v325
    %328 = vrot.lane.b32.xlu0 %v326, 64
    %v329 = vpop.permute.xlu0 %328
    %v331 = vmul.f32 %v314, %v329
    %s332 = smul.u32 1, 2
    %s333 = smul.addr %s332, 8
    %s334 = scalar_lea.vmem [#allocation2], %s333
    %v335 = vld [vmem:[%s334] sm:$0xff]
    %v336 = vld [vmem:[%s334 + $0x8] sm:$0xff]
    %v338 = vsel %vm232, %v331, 0
    %340 = vmatprep.subr.mxu0 0.0
    %341 = vmatpush1.msra.mxu0 0.0
    %342 = vmatprep.subr.mxu0 0.0
    %343 = vmatpush1.msra.mxu0 0.0
    %344 = vmatprep.subr.mxu0 0.0
    %345 = vmatpush1.msra.mxu0 0.0
    %346 = vmatprep.subr.mxu0 0.0
    %347 = vmatpush1.msra.mxu0 0.0
    %348 = vmatprep.subr.mxu0 0.0
    %349 = vmatpush1.msra.mxu0 0.0
    %350 = vmatprep.subr.mxu0 0.0
    %351 = vmatpush1.msra.mxu0 0.0
    %352 = vmatprep.subr.mxu0 0.0
    %353 = vmatpush1.msra.mxu0 0.0
    %354 = vmatprep.subr.mxu0 0.0
    %355 = vmatpush1.msra.mxu0 0.0
    %356 = vmatprep.subr.mxu0 %v226
    %357 = vmatpush1.msra.mxu0 %v225
    %358 = vmatprep.subr.mxu0 %v224
    %359 = vmatpush1.msra.mxu0 %v223
    %360 = vmatprep.subr.mxu0 %v222
    %361 = vmatpush1.msra.mxu0 %v221
    %362 = vmatprep.subr.mxu0 %v220
    %363 = vmatpush1.msra.mxu0 %v219
    %364 = vmatprep.subr.mxu0 %v218
    %365 = vmatpush1.msra.mxu0 %v217
    %366 = vmatprep.subr.mxu0 %v216
    %367 = vmatpush1.msra.mxu0 %v215
    %368 = vmatprep.subr.mxu0 %v214
    %369 = vmatpush1.msra.mxu0 %v213
    %370 = vmatprep.subr.mxu0 %v212
    %371 = vmatpush1.msra.mxu0 %v211
    %372 = vmatprep.subr.mxu0 0.0
    %373 = vmatpush2.msra.mxu0 0.0
    %374 = vmatprep.subr.mxu0 0.0
    %375 = vmatpush2.msra.mxu0 0.0
    %376 = vmatprep.subr.mxu0 0.0
    %377 = vmatpush2.msra.mxu0 0.0
    %378 = vmatprep.subr.mxu0 0.0
    %379 = vmatpush2.msra.mxu0 0.0
    %380 = vmatprep.subr.mxu0 0.0
    %381 = vmatpush2.msra.mxu0 0.0
    %382 = vmatprep.subr.mxu0 0.0
    %383 = vmatpush2.msra.mxu0 0.0
    %384 = vmatprep.subr.mxu0 0.0
    %385 = vmatpush2.msra.mxu0 0.0
    %386 = vmatprep.subr.mxu0 0.0
    %387 = vmatpush2.msra.mxu0 0.0
    %388 = vmatprep.subr.mxu0 0.0
    %389 = vmatpush2.msra.mxu0 0.0
    %390 = vmatprep.subr.mxu0 0.0
    %391 = vmatpush2.msra.mxu0 0.0
    %392 = vmatprep.subr.mxu0 0.0
    %393 = vmatpush2.msra.mxu0 0.0
    %394 = vmatprep.subr.mxu0 0.0
    %395 = vmatpush2.msra.mxu0 0.0
    %396 = vmatprep.subr.mxu0 0.0
    %397 = vmatpush2.msra.mxu0 0.0
    %398 = vmatprep.subr.mxu0 0.0
    %399 = vmatpush2.msra.mxu0 0.0
    %400 = vmatprep.subr.mxu0 0.0
    %401 = vmatpush2.msra.mxu0 0.0
    %402 = vmatprep.subr.mxu0 0.0
    %403 = vmatpush2.msra.mxu0 0.0
    %404 = vmatprep.mubr.f32.mxu0 0.0
    %405 = vmatmul.mubr.f32.gmra.mxu0 %v338
    %v406 = vpop.f32.mrf.mxu0
    %v407 = vadd.f32 0.0, %v406
    %v408 = vpop.f32.mrf.mxu0
    %v409 = vadd.f32 0.0, %v408
    %410 = vdwg.mxu0
    %v411 = vadd.f32 %v335, %v407
    %v412 = vadd.f32 %v336, %v409
    %v413 = vtanh.pop %v411
    %v414 = vtanh.pop %v412
    %v415 = vmul.f32 %v413, 0.5
    %v416 = vmul.f32 %v414, 0.5
    %v417 = vadd.f32 %v415, 0.5
    %v418 = vadd.f32 %v416, 0.5
    %v419 = vmul.f32 %v417, %v325
    %421 = vrot.lane.b32.xlu0 %v414, 64
    %v422 = vpop.permute.xlu0 %421
    %v424 = vmul.f32 %v417, %v422
    %426 = vrot.lane.b32.xlu0 %v424, 64
    %v427 = vpop.permute.xlu0 %426
    %v429 = vadd.f32 %v419, %v427
    %v430 = vtanh.pop %v429
    %432 = vrot.lane.b32.xlu0 %v430, 64
    %v433 = vpop.permute.xlu0 %432
    %v435 = vmul.f32 %v418, %v433
    %s436 = smul.u32 2, 2
    %s437 = smul.addr %s436, 8
    %s438 = scalar_lea.vmem [#allocation2], %s437
    %v439 = vld [vmem:[%s438] sm:$0xff]
    %v440 = vld [vmem:[%s438 + $0x8] sm:$0xff]
    %v442 = vsel %vm232, %v435, 0
    %444 = vmatprep.subr.mxu0 0.0
    %445 = vmatpush1.msra.mxu0 0.0
    %446 = vmatprep.subr.mxu0 0.0
    %447 = vmatpush1.msra.mxu0 0.0
    %448 = vmatprep.subr.mxu0 0.0
    %449 = vmatpush1.msra.mxu0 0.0
    %450 = vmatprep.subr.mxu0 0.0
    %451 = vmatpush1.msra.mxu0 0.0
    %452 = vmatprep.subr.mxu0 0.0
    %453 = vmatpush1.msra.mxu0 0.0
    %454 = vmatprep.subr.mxu0 0.0
    %455 = vmatpush1.msra.mxu0 0.0
    %456 = vmatprep.subr.mxu0 0.0
    %457 = vmatpush1.msra.mxu0 0.0
    %458 = vmatprep.subr.mxu0 0.0
    %459 = vmatpush1.msra.mxu0 0.0
    %460 = vmatprep.subr.mxu0 %v226
    %461 = vmatpush1.msra.mxu0 %v225
    %462 = vmatprep.subr.mxu0 %v224
    %463 = vmatpush1.msra.mxu0 %v223
    %464 = vmatprep.subr.mxu0 %v222
    %465 = vmatpush1.msra.mxu0 %v221
    %466 = vmatprep.subr.mxu0 %v220
    %467 = vmatpush1.msra.mxu0 %v219
    %468 = vmatprep.subr.mxu0 %v218
    %469 = vmatpush1.msra.mxu0 %v217
    %470 = vmatprep.subr.mxu0 %v216
    %471 = vmatpush1.msra.mxu0 %v215
    %472 = vmatprep.subr.mxu0 %v214
    %473 = vmatpush1.msra.mxu0 %v213
    %474 = vmatprep.subr.mxu0 %v212
    %475 = vmatpush1.msra.mxu0 %v211
    %476 = vmatprep.subr.mxu0 0.0
    %477 = vmatpush2.msra.mxu0 0.0
    %478 = vmatprep.subr.mxu0 0.0
    %479 = vmatpush2.msra.mxu0 0.0
    %480 = vmatprep.subr.mxu0 0.0
    %481 = vmatpush2.msra.mxu0 0.0
    %482 = vmatprep.subr.mxu0 0.0
    %483 = vmatpush2.msra.mxu0 0.0
    %484 = vmatprep.subr.mxu0 0.0
    %485 = vmatpush2.msra.mxu0 0.0
    %486 = vmatprep.subr.mxu0 0.0
    %487 = vmatpush2.msra.mxu0 0.0
    %488 = vmatprep.subr.mxu0 0.0
    %489 = vmatpush2.msra.mxu0 0.0
    %490 = vmatprep.subr.mxu0 0.0
    %491 = vmatpush2.msra.mxu0 0.0
    %492 = vmatprep.subr.mxu0 0.0
    %493 = vmatpush2.msra.mxu0 0.0
    %494 = vmatprep.subr.mxu0 0.0
    %495 = vmatpush2.msra.mxu0 0.0
    %496 = vmatprep.subr.mxu0 0.0
    %497 = vmatpush2.msra.mxu0 0.0
    %498 = vmatprep.subr.mxu0 0.0
    %499 = vmatpush2.msra.mxu0 0.0
    %500 = vmatprep.subr.mxu0 0.0
    %501 = vmatpush2.msra.mxu0 0.0
    %502 = vmatprep.subr.mxu0 0.0
    %503 = vmatpush2.msra.mxu0 0.0
    %504 = vmatprep.subr.mxu0 0.0
    %505 = vmatpush2.msra.mxu0 0.0
    %506 = vmatprep.subr.mxu0 0.0
    %507 = vmatpush2.msra.mxu0 0.0
    %508 = vmatprep.mubr.f32.mxu0 0.0
    %509 = vmatmul.mubr.f32.gmra.mxu0 %v442
    %v510 = vpop.f32.mrf.mxu0
    %v511 = vadd.f32 0.0, %v510
    %v512 = vpop.f32.mrf.mxu0
    %v513 = vadd.f32 0.0, %v512
    %514 = vdwg.mxu0
    %v515 = vadd.f32 %v439, %v511
    %v516 = vadd.f32 %v440, %v513
    %v517 = vtanh.pop %v515
    %v518 = vtanh.pop %v516
    %v519 = vmul.f32 %v517, 0.5
    %v520 = vmul.f32 %v518, 0.5
    %v521 = vadd.f32 %v519, 0.5
    %v522 = vadd.f32 %v520, 0.5
    %v523 = vmul.f32 %v521, %v429
    %525 = vrot.lane.b32.xlu0 %v518, 64
    %v526 = vpop.permute.xlu0 %525
    %v528 = vmul.f32 %v521, %v526
    %530 = vrot.lane.b32.xlu0 %v528, 64
    %v531 = vpop.permute.xlu0 %530
    %v533 = vadd.f32 %v523, %v531
    %v534 = vtanh.pop %v533
    %536 = vrot.lane.b32.xlu0 %v534, 64
    %v537 = vpop.permute.xlu0 %536
    %v539 = vmul.f32 %v522, %v537
    %s540 = smul.u32 3, 2
    %s541 = smul.addr %s540, 8
    %s542 = scalar_lea.vmem [#allocation2], %s541
    %v543 = vld [vmem:[%s542] sm:$0xff]
    %v544 = vld [vmem:[%s542 + $0x8] sm:$0xff]
    %v546 = vsel %vm232, %v539, 0
    %548 = vmatprep.subr.mxu0 0.0
    %549 = vmatpush1.msra.mxu0 0.0
    %550 = vmatprep.subr.mxu0 0.0
    %551 = vmatpush1.msra.mxu0 0.0
    %552 = vmatprep.subr.mxu0 0.0
    %553 = vmatpush1.msra.mxu0 0.0
    %554 = vmatprep.subr.mxu0 0.0
    %555 = vmatpush1.msra.mxu0 0.0
    %556 = vmatprep.subr.mxu0 0.0
    %557 = vmatpush1.msra.mxu0 0.0
    %558 = vmatprep.subr.mxu0 0.0
    %559 = vmatpush1.msra.mxu0 0.0
    %560 = vmatprep.subr.mxu0 0.0
    %561 = vmatpush1.msra.mxu0 0.0
    %562 = vmatprep.subr.mxu0 0.0
    %563 = vmatpush1.msra.mxu0 0.0
    %564 = vmatprep.subr.mxu0 %v226
    %565 = vmatpush1.msra.mxu0 %v225
    %566 = vmatprep.subr.mxu0 %v224
    %567 = vmatpush1.msra.mxu0 %v223
    %568 = vmatprep.subr.mxu0 %v222
    %569 = vmatpush1.msra.mxu0 %v221
    %570 = vmatprep.subr.mxu0 %v220
    %571 = vmatpush1.msra.mxu0 %v219
    %572 = vmatprep.subr.mxu0 %v218
    %573 = vmatpush1.msra.mxu0 %v217
    %574 = vmatprep.subr.mxu0 %v216
    %575 = vmatpush1.msra.mxu0 %v215
    %576 = vmatprep.subr.mxu0 %v214
    %577 = vmatpush1.msra.mxu0 %v213
    %578 = vmatprep.subr.mxu0 %v212
    %579 = vmatpush1.msra.mxu0 %v211
    %580 = vmatprep.subr.mxu0 0.0
    %581 = vmatpush2.msra.mxu0 0.0
    %582 = vmatprep.subr.mxu0 0.0
    %583 = vmatpush2.msra.mxu0 0.0
    %584 = vmatprep.subr.mxu0 0.0
    %585 = vmatpush2.msra.mxu0 0.0
    %586 = vmatprep.subr.mxu0 0.0
    %587 = vmatpush2.msra.mxu0 0.0
    %588 = vmatprep.subr.mxu0 0.0
    %589 = vmatpush2.msra.mxu0 0.0
    %590 = vmatprep.subr.mxu0 0.0
    %591 = vmatpush2.msra.mxu0 0.0
    %592 = vmatprep.subr.mxu0 0.0
    %593 = vmatpush2.msra.mxu0 0.0
    %594 = vmatprep.subr.mxu0 0.0
    %595 = vmatpush2.msra.mxu0 0.0
    %596 = vmatprep.subr.mxu0 0.0
    %597 = vmatpush2.msra.mxu0 0.0
    %598 = vmatprep.subr.mxu0 0.0
    %599 = vmatpush2.msra.mxu0 0.0
    %600 = vmatprep.subr.mxu0 0.0
    %601 = vmatpush2.msra.mxu0 0.0
    %602 = vmatprep.subr.mxu0 0.0
    %603 = vmatpush2.msra.mxu0 0.0
    %604 = vmatprep.subr.mxu0 0.0
    %605 = vmatpush2.msra.mxu0 0.0
    %606 = vmatprep.subr.mxu0 0.0
    %607 = vmatpush2.msra.mxu0 0.0
    %608 = vmatprep.subr.mxu0 0.0
    %609 = vmatpush2.msra.mxu0 0.0
    %610 = vmatprep.subr.mxu0 0.0
    %611 = vmatpush2.msra.mxu0 0.0
    %612 = vmatprep.mubr.f32.mxu0 0.0
    %613 = vmatmul.mubr.f32.gmra.mxu0 %v546
    %v614 = vpop.f32.mrf.mxu0
    %v615 = vadd.f32 0.0, %v614
    %v616 = vpop.f32.mrf.mxu0
    %v617 = vadd.f32 0.0, %v616
    %618 = vdwg.mxu0
    %v619 = vadd.f32 %v543, %v615
    %v620 = vadd.f32 %v544, %v617
    %v621 = vtanh.pop %v619
    %v622 = vtanh.pop %v620
    %v623 = vmul.f32 %v621, 0.5
    %v624 = vmul.f32 %v622, 0.5
    %v625 = vadd.f32 %v623, 0.5
    %v626 = vadd.f32 %v624, 0.5
    %v627 = vmul.f32 %v625, %v533
    %629 = vrot.lane.b32.xlu0 %v622, 64
    %v630 = vpop.permute.xlu0 %629
    %v632 = vmul.f32 %v625, %v630
    %634 = vrot.lane.b32.xlu0 %v632, 64
    %v635 = vpop.permute.xlu0 %634
    %v637 = vadd.f32 %v627, %v635
    %v638 = vtanh.pop %v637
    %640 = vrot.lane.b32.xlu0 %v638, 64
    %v641 = vpop.permute.xlu0 %640
    %v643 = vmul.f32 %v626, %v641
    %s644 = smul.u32 4, 2
    %s645 = smul.addr %s644, 8
    %s646 = scalar_lea.vmem [#allocation2], %s645
    %v647 = vld [vmem:[%s646] sm:$0xff]
    %v648 = vld [vmem:[%s646 + $0x8] sm:$0xff]
    %v650 = vsel %vm232, %v643, 0
    %652 = vmatprep.subr.mxu0 0.0
    %653 = vmatpush1.msra.mxu0 0.0
    %654 = vmatprep.subr.mxu0 0.0
    %655 = vmatpush1.msra.mxu0 0.0
    %656 = vmatprep.subr.mxu0 0.0
    %657 = vmatpush1.msra.mxu0 0.0
    %658 = vmatprep.subr.mxu0 0.0
    %659 = vmatpush1.msra.mxu0 0.0
    %660 = vmatprep.subr.mxu0 0.0
    %661 = vmatpush1.msra.mxu0 0.0
    %662 = vmatprep.subr.mxu0 0.0
    %663 = vmatpush1.msra.mxu0 0.0
    %664 = vmatprep.subr.mxu0 0.0
    %665 = vmatpush1.msra.mxu0 0.0
    %666 = vmatprep.subr.mxu0 0.0
    %667 = vmatpush1.msra.mxu0 0.0
    %668 = vmatprep.subr.mxu0 %v226
    %669 = vmatpush1.msra.mxu0 %v225
    %670 = vmatprep.subr.mxu0 %v224
    %671 = vmatpush1.msra.mxu0 %v223
    %672 = vmatprep.subr.mxu0 %v222
    %673 = vmatpush1.msra.mxu0 %v221
    %674 = vmatprep.subr.mxu0 %v220
    %675 = vmatpush1.msra.mxu0 %v219
    %676 = vmatprep.subr.mxu0 %v218
    %677 = vmatpush1.msra.mxu0 %v217
    %678 = vmatprep.subr.mxu0 %v216
    %679 = vmatpush1.msra.mxu0 %v215
    %680 = vmatprep.subr.mxu0 %v214
    %681 = vmatpush1.msra.mxu0 %v213
    %682 = vmatprep.subr.mxu0 %v212
    %683 = vmatpush1.msra.mxu0 %v211
    %684 = vmatprep.subr.mxu0 0.0
    %685 = vmatpush2.msra.mxu0 0.0
    %686 = vmatprep.subr.mxu0 0.0
    %687 = vmatpush2.msra.mxu0 0.0
    %688 = vmatprep.subr.mxu0 0.0
    %689 = vmatpush2.msra.mxu0 0.0
    %690 = vmatprep.subr.mxu0 0.0
    %691 = vmatpush2.msra.mxu0 0.0
    %692 = vmatprep.subr.mxu0 0.0
    %693 = vmatpush2.msra.mxu0 0.0
    %694 = vmatprep.subr.mxu0 0.0
    %695 = vmatpush2.msra.mxu0 0.0
    %696 = vmatprep.subr.mxu0 0.0
    %697 = vmatpush2.msra.mxu0 0.0
    %698 = vmatprep.subr.mxu0 0.0
    %699 = vmatpush2.msra.mxu0 0.0
    %700 = vmatprep.subr.mxu0 0.0
    %701 = vmatpush2.msra.mxu0 0.0
    %702 = vmatprep.subr.mxu0 0.0
    %703 = vmatpush2.msra.mxu0 0.0
    %704 = vmatprep.subr.mxu0 0.0
    %705 = vmatpush2.msra.mxu0 0.0
    %706 = vmatprep.subr.mxu0 0.0
    %707 = vmatpush2.msra.mxu0 0.0
    %708 = vmatprep.subr.mxu0 0.0
    %709 = vmatpush2.msra.mxu0 0.0
    %710 = vmatprep.subr.mxu0 0.0
    %711 = vmatpush2.msra.mxu0 0.0
    %712 = vmatprep.subr.mxu0 0.0
    %713 = vmatpush2.msra.mxu0 0.0
    %714 = vmatprep.subr.mxu0 0.0
    %715 = vmatpush2.msra.mxu0 0.0
    %716 = vmatprep.mubr.f32.mxu0 0.0
    %717 = vmatmul.mubr.f32.gmra.mxu0 %v650
    %v718 = vpop.f32.mrf.mxu0
    %v719 = vadd.f32 0.0, %v718
    %v720 = vpop.f32.mrf.mxu0
    %v721 = vadd.f32 0.0, %v720
    %722 = vdwg.mxu0
    %v723 = vadd.f32 %v647, %v719
    %v724 = vadd.f32 %v648, %v721
    %v725 = vtanh.pop %v723
    %v726 = vtanh.pop %v724
    %v727 = vmul.f32 %v725, 0.5
    %v728 = vmul.f32 %v726, 0.5
    %v729 = vadd.f32 %v727, 0.5
    %v730 = vadd.f32 %v728, 0.5
    %v731 = vmul.f32 %v729, %v637
    %733 = vrot.lane.b32.xlu0 %v726, 64
    %v734 = vpop.permute.xlu0 %733
    %v736 = vmul.f32 %v729, %v734
    %738 = vrot.lane.b32.xlu0 %v736, 64
    %v739 = vpop.permute.xlu0 %738
    %v741 = vadd.f32 %v731, %v739
    %v742 = vtanh.pop %v741
    %744 = vrot.lane.b32.xlu0 %v742, 64
    %v745 = vpop.permute.xlu0 %744
    %v747 = vmul.f32 %v730, %v745
    %s748 = smul.u32 5, 2
    %s749 = smul.addr %s748, 8
    %s750 = scalar_lea.vmem [#allocation2], %s749
    %v751 = vld [vmem:[%s750] sm:$0xff]
    %v752 = vld [vmem:[%s750 + $0x8] sm:$0xff]
    %v754 = vsel %vm232, %v747, 0
    %756 = vmatprep.subr.mxu0 0.0
    %757 = vmatpush1.msra.mxu0 0.0
    %758 = vmatprep.subr.mxu0 0.0
    %759 = vmatpush1.msra.mxu0 0.0
    %760 = vmatprep.subr.mxu0 0.0
    %761 = vmatpush1.msra.mxu0 0.0
    %762 = vmatprep.subr.mxu0 0.0
    %763 = vmatpush1.msra.mxu0 0.0
    %764 = vmatprep.subr.mxu0 0.0
    %765 = vmatpush1.msra.mxu0 0.0
    %766 = vmatprep.subr.mxu0 0.0
    %767 = vmatpush1.msra.mxu0 0.0
    %768 = vmatprep.subr.mxu0 0.0
    %769 = vmatpush1.msra.mxu0 0.0
    %770 = vmatprep.subr.mxu0 0.0
    %771 = vmatpush1.msra.mxu0 0.0
    %772 = vmatprep.subr.mxu0 %v226
    %773 = vmatpush1.msra.mxu0 %v225
    %774 = vmatprep.subr.mxu0 %v224
    %775 = vmatpush1.msra.mxu0 %v223
    %776 = vmatprep.subr.mxu0 %v222
    %777 = vmatpush1.msra.mxu0 %v221
    %778 = vmatprep.subr.mxu0 %v220
    %779 = vmatpush1.msra.mxu0 %v219
    %780 = vmatprep.subr.mxu0 %v218
    %781 = vmatpush1.msra.mxu0 %v217
    %782 = vmatprep.subr.mxu0 %v216
    %783 = vmatpush1.msra.mxu0 %v215
    %784 = vmatprep.subr.mxu0 %v214
    %785 = vmatpush1.msra.mxu0 %v213
    %786 = vmatprep.subr.mxu0 %v212
    %787 = vmatpush1.msra.mxu0 %v211
    %788 = vmatprep.subr.mxu0 0.0
    %789 = vmatpush2.msra.mxu0 0.0
    %790 = vmatprep.subr.mxu0 0.0
    %791 = vmatpush2.msra.mxu0 0.0
    %792 = vmatprep.subr.mxu0 0.0
    %793 = vmatpush2.msra.mxu0 0.0
    %794 = vmatprep.subr.mxu0 0.0
    %795 = vmatpush2.msra.mxu0 0.0
    %796 = vmatprep.subr.mxu0 0.0
    %797 = vmatpush2.msra.mxu0 0.0
    %798 = vmatprep.subr.mxu0 0.0
    %799 = vmatpush2.msra.mxu0 0.0
    %800 = vmatprep.subr.mxu0 0.0
    %801 = vmatpush2.msra.mxu0 0.0
    %802 = vmatprep.subr.mxu0 0.0
    %803 = vmatpush2.msra.mxu0 0.0
    %804 = vmatprep.subr.mxu0 0.0
    %805 = vmatpush2.msra.mxu0 0.0
    %806 = vmatprep.subr.mxu0 0.0
    %807 = vmatpush2.msra.mxu0 0.0
    %808 = vmatprep.subr.mxu0 0.0
    %809 = vmatpush2.msra.mxu0 0.0
    %810 = vmatprep.subr.mxu0 0.0
    %811 = vmatpush2.msra.mxu0 0.0
    %812 = vmatprep.subr.mxu0 0.0
    %813 = vmatpush2.msra.mxu0 0.0
    %814 = vmatprep.subr.mxu0 0.0
    %815 = vmatpush2.msra.mxu0 0.0
    %816 = vmatprep.subr.mxu0 0.0
    %817 = vmatpush2.msra.mxu0 0.0
    %818 = vmatprep.subr.mxu0 0.0
    %819 = vmatpush2.msra.mxu0 0.0
    %820 = vmatprep.mubr.f32.mxu0 0.0
    %821 = vmatmul.mubr.f32.gmra.mxu0 %v754
    %v822 = vpop.f32.mrf.mxu0
    %v823 = vadd.f32 0.0, %v822
    %v824 = vpop.f32.mrf.mxu0
    %v825 = vadd.f32 0.0, %v824
    %826 = vdwg.mxu0
    %v827 = vadd.f32 %v751, %v823
    %v828 = vadd.f32 %v752, %v825
    %v829 = vtanh.pop %v827
    %v830 = vtanh.pop %v828
    %v831 = vmul.f32 %v829, 0.5
    %v832 = vmul.f32 %v830, 0.5
    %v833 = vadd.f32 %v831, 0.5
    %v834 = vadd.f32 %v832, 0.5
    %v835 = vmul.f32 %v833, %v741
    %837 = vrot.lane.b32.xlu0 %v830, 64
    %v838 = vpop.permute.xlu0 %837
    %v840 = vmul.f32 %v833, %v838
    %842 = vrot.lane.b32.xlu0 %v840, 64
    %v843 = vpop.permute.xlu0 %842
    %v845 = vadd.f32 %v835, %v843
    %v846 = vtanh.pop %v845
    %848 = vrot.lane.b32.xlu0 %v846, 64
    %v849 = vpop.permute.xlu0 %848
    %v851 = vmul.f32 %v834, %v849
    %s852 = smul.u32 6, 2
    %s853 = smul.addr %s852, 8
    %s854 = scalar_lea.vmem [#allocation2], %s853
    %v855 = vld [vmem:[%s854] sm:$0xff]
    %v856 = vld [vmem:[%s854 + $0x8] sm:$0xff]
    %v858 = vsel %vm232, %v851, 0
    %860 = vmatprep.subr.mxu0 0.0
    %861 = vmatpush1.msra.mxu0 0.0
    %862 = vmatprep.subr.mxu0 0.0
    %863 = vmatpush1.msra.mxu0 0.0
    %864 = vmatprep.subr.mxu0 0.0
    %865 = vmatpush1.msra.mxu0 0.0
    %866 = vmatprep.subr.mxu0 0.0
    %867 = vmatpush1.msra.mxu0 0.0
    %868 = vmatprep.subr.mxu0 0.0
    %869 = vmatpush1.msra.mxu0 0.0
    %870 = vmatprep.subr.mxu0 0.0
    %871 = vmatpush1.msra.mxu0 0.0
    %872 = vmatprep.subr.mxu0 0.0
    %873 = vmatpush1.msra.mxu0 0.0
    %874 = vmatprep.subr.mxu0 0.0
    %875 = vmatpush1.msra.mxu0 0.0
    %876 = vmatprep.subr.mxu0 %v226
    %877 = vmatpush1.msra.mxu0 %v225
    %878 = vmatprep.subr.mxu0 %v224
    %879 = vmatpush1.msra.mxu0 %v223
    %880 = vmatprep.subr.mxu0 %v222
    %881 = vmatpush1.msra.mxu0 %v221
    %882 = vmatprep.subr.mxu0 %v220
    %883 = vmatpush1.msra.mxu0 %v219
    %884 = vmatprep.subr.mxu0 %v218
    %885 = vmatpush1.msra.mxu0 %v217
    %886 = vmatprep.subr.mxu0 %v216
    %887 = vmatpush1.msra.mxu0 %v215
    %888 = vmatprep.subr.mxu0 %v214
    %889 = vmatpush1.msra.mxu0 %v213
    %890 = vmatprep.subr.mxu0 %v212
    %891 = vmatpush1.msra.mxu0 %v211
    %892 = vmatprep.subr.mxu0 0.0
    %893 = vmatpush2.msra.mxu0 0.0
    %894 = vmatprep.subr.mxu0 0.0
    %895 = vmatpush2.msra.mxu0 0.0
    %896 = vmatprep.subr.mxu0 0.0
    %897 = vmatpush2.msra.mxu0 0.0
    %898 = vmatprep.subr.mxu0 0.0
    %899 = vmatpush2.msra.mxu0 0.0
    %900 = vmatprep.subr.mxu0 0.0
    %901 = vmatpush2.msra.mxu0 0.0
    %902 = vmatprep.subr.mxu0 0.0
    %903 = vmatpush2.msra.mxu0 0.0
    %904 = vmatprep.subr.mxu0 0.0
    %905 = vmatpush2.msra.mxu0 0.0
    %906 = vmatprep.subr.mxu0 0.0
    %907 = vmatpush2.msra.mxu0 0.0
    %908 = vmatprep.subr.mxu0 0.0
    %909 = vmatpush2.msra.mxu0 0.0
    %910 = vmatprep.subr.mxu0 0.0
    %911 = vmatpush2.msra.mxu0 0.0
    %912 = vmatprep.subr.mxu0 0.0
    %913 = vmatpush2.msra.mxu0 0.0
    %914 = vmatprep.subr.mxu0 0.0
    %915 = vmatpush2.msra.mxu0 0.0
    %916 = vmatprep.subr.mxu0 0.0
    %917 = vmatpush2.msra.mxu0 0.0
    %918 = vmatprep.subr.mxu0 0.0
    %919 = vmatpush2.msra.mxu0 0.0
    %920 = vmatprep.subr.mxu0 0.0
    %921 = vmatpush2.msra.mxu0 0.0
    %922 = vmatprep.subr.mxu0 0.0
    %923 = vmatpush2.msra.mxu0 0.0
    %924 = vmatprep.mubr.f32.mxu0 0.0
    %925 = vmatmul.mubr.f32.gmra.mxu0 %v858
    %v926 = vpop.f32.mrf.mxu0
    %v927 = vadd.f32 0.0, %v926
    %v928 = vpop.f32.mrf.mxu0
    %v929 = vadd.f32 0.0, %v928
    %930 = vdwg.mxu0
    %v931 = vadd.f32 %v855, %v927
    %v932 = vadd.f32 %v856, %v929
    %v933 = vtanh.pop %v931
    %v934 = vtanh.pop %v932
    %v935 = vmul.f32 %v933, 0.5
    %v936 = vmul.f32 %v934, 0.5
    %v937 = vadd.f32 %v935, 0.5
    %v938 = vadd.f32 %v936, 0.5
    %v939 = vmul.f32 %v937, %v845
    %941 = vrot.lane.b32.xlu0 %v934, 64
    %v942 = vpop.permute.xlu0 %941
    %v944 = vmul.f32 %v937, %v942
    %946 = vrot.lane.b32.xlu0 %v944, 64
    %v947 = vpop.permute.xlu0 %946
    %v949 = vadd.f32 %v939, %v947
    %v950 = vtanh.pop %v949
    %952 = vrot.lane.b32.xlu0 %v950, 64
    %v953 = vpop.permute.xlu0 %952
    %v955 = vmul.f32 %v938, %v953
    %s956 = smul.u32 7, 2
    %s957 = smul.addr %s956, 8
    %s958 = scalar_lea.vmem [#allocation2], %s957
    %v959 = vld [vmem:[%s958] sm:$0xff]
    %v960 = vld [vmem:[%s958 + $0x8] sm:$0xff]
    %v962 = vsel %vm232, %v955, 0
    %964 = vmatprep.subr.mxu0 0.0
    %965 = vmatpush1.msra.mxu0 0.0
    %966 = vmatprep.subr.mxu0 0.0
    %967 = vmatpush1.msra.mxu0 0.0
    %968 = vmatprep.subr.mxu0 0.0
    %969 = vmatpush1.msra.mxu0 0.0
    %970 = vmatprep.subr.mxu0 0.0
    %971 = vmatpush1.msra.mxu0 0.0
    %972 = vmatprep.subr.mxu0 0.0
    %973 = vmatpush1.msra.mxu0 0.0
    %974 = vmatprep.subr.mxu0 0.0
    %975 = vmatpush1.msra.mxu0 0.0
    %976 = vmatprep.subr.mxu0 0.0
    %977 = vmatpush1.msra.mxu0 0.0
    %978 = vmatprep.subr.mxu0 0.0
    %979 = vmatpush1.msra.mxu0 0.0
    %980 = vmatprep.subr.mxu0 %v226
    %981 = vmatpush1.msra.mxu0 %v225
    %982 = vmatprep.subr.mxu0 %v224
    %983 = vmatpush1.msra.mxu0 %v223
    %984 = vmatprep.subr.mxu0 %v222
    %985 = vmatpush1.msra.mxu0 %v221
    %986 = vmatprep.subr.mxu0 %v220
    %987 = vmatpush1.msra.mxu0 %v219
    %988 = vmatprep.subr.mxu0 %v218
    %989 = vmatpush1.msra.mxu0 %v217
    %990 = vmatprep.subr.mxu0 %v216
    %991 = vmatpush1.msra.mxu0 %v215
    %992 = vmatprep.subr.mxu0 %v214
    %993 = vmatpush1.msra.mxu0 %v213
    %994 = vmatprep.subr.mxu0 %v212
    %995 = vmatpush1.msra.mxu0 %v211
    %996 = vmatprep.subr.mxu0 0.0
    %997 = vmatpush2.msra.mxu0 0.0
    %998 = vmatprep.subr.mxu0 0.0
    %999 = vmatpush2.msra.mxu0 0.0
    %1000 = vmatprep.subr.mxu0 0.0
    %1001 = vmatpush2.msra.mxu0 0.0
    %1002 = vmatprep.subr.mxu0 0.0
    %1003 = vmatpush2.msra.mxu0 0.0
    %1004 = vmatprep.subr.mxu0 0.0
    %1005 = vmatpush2.msra.mxu0 0.0
    %1006 = vmatprep.subr.mxu0 0.0
    %1007 = vmatpush2.msra.mxu0 0.0
    %1008 = vmatprep.subr.mxu0 0.0
    %1009 = vmatpush2.msra.mxu0 0.0
    %1010 = vmatprep.subr.mxu0 0.0
    %1011 = vmatpush2.msra.mxu0 0.0
    %1012 = vmatprep.subr.mxu0 0.0
    %1013 = vmatpush2.msra.mxu0 0.0
    %1014 = vmatprep.subr.mxu0 0.0
    %1015 = vmatpush2.msra.mxu0 0.0
    %1016 = vmatprep.subr.mxu0 0.0
    %1017 = vmatpush2.msra.mxu0 0.0
    %1018 = vmatprep.subr.mxu0 0.0
    %1019 = vmatpush2.msra.mxu0 0.0
    %1020 = vmatprep.subr.mxu0 0.0
    %1021 = vmatpush2.msra.mxu0 0.0
    %1022 = vmatprep.subr.mxu0 0.0
    %1023 = vmatpush2.msra.mxu0 0.0
    %1024 = vmatprep.subr.mxu0 0.0
    %1025 = vmatpush2.msra.mxu0 0.0
    %1026 = vmatprep.subr.mxu0 0.0
    %1027 = vmatpush2.msra.mxu0 0.0
    %1028 = vmatprep.mubr.f32.mxu0 0.0
    %1029 = vmatmul.mubr.f32.gmra.mxu0 %v962
    %v1030 = vpop.f32.mrf.mxu0
    %v1031 = vadd.f32 0.0, %v1030
    %v1032 = vpop.f32.mrf.mxu0
    %v1033 = vadd.f32 0.0, %v1032
    %1034 = vdwg.mxu0
    %v1035 = vadd.f32 %v959, %v1031
    %v1036 = vadd.f32 %v960, %v1033
    %v1037 = vtanh.pop %v1035
    %v1038 = vtanh.pop %v1036
    %v1039 = vmul.f32 %v1037, 0.5
    %v1040 = vmul.f32 %v1038, 0.5
    %v1041 = vadd.f32 %v1039, 0.5
    %v1042 = vadd.f32 %v1040, 0.5
    %v1043 = vmul.f32 %v1041, %v949
    %1045 = vrot.lane.b32.xlu0 %v1038, 64
    %v1046 = vpop.permute.xlu0 %1045
    %v1048 = vmul.f32 %v1041, %v1046
    %1050 = vrot.lane.b32.xlu0 %v1048, 64
    %v1051 = vpop.permute.xlu0 %1050
    %v1053 = vadd.f32 %v1043, %v1051
    %v1054 = vtanh.pop %v1053
    %1056 = vrot.lane.b32.xlu0 %v1054, 64
    %v1057 = vpop.permute.xlu0 %1056
    %v1059 = vmul.f32 %v1042, %v1057
    %v1060 = vld [vmem:[%s4] sm:$0xff]
    %v1061 = vld [vmem:[%s4 + $0x8] sm:$0xff]
    %v1062 = vld [vmem:[%s4 + $0x10] sm:$0xff]
    %v1063 = vld [vmem:[%s4 + $0x18] sm:$0xff]
    %v1064 = vld [vmem:[%s4 + $0x20] sm:$0xff]
    %v1065 = vld [vmem:[%s4 + $0x28] sm:$0xff]
    %v1066 = vld [vmem:[%s4 + $0x30] sm:$0xff]
    %v1067 = vld [vmem:[%s4 + $0x38] sm:$0xff]
    %v1068 = vld [vmem:[%s5] sm:$0x1]
    %v1070 = vlaneseq
    %v1071 = vshrl.u32 %v1070, 7
    %v1072 = vsub.s32 0, %v1071
    %v1073 = vrot.slane %v1068, %v1072
    %v1076 = vsel %vm232, %v1059, 0
    %1078 = vmatprep.subr.mxu0 0.0
    %1079 = vmatpush1.msra.mxu0 0.0
    %1080 = vmatprep.subr.mxu0 0.0
    %1081 = vmatpush1.msra.mxu0 0.0
    %1082 = vmatprep.subr.mxu0 0.0
    %1083 = vmatpush1.msra.mxu0 0.0
    %1084 = vmatprep.subr.mxu0 0.0
    %1085 = vmatpush1.msra.mxu0 0.0
    %1086 = vmatprep.subr.mxu0 0.0
    %1087 = vmatpush1.msra.mxu0 0.0
    %1088 = vmatprep.subr.mxu0 0.0
    %1089 = vmatpush1.msra.mxu0 0.0
    %1090 = vmatprep.subr.mxu0 0.0
    %1091 = vmatpush1.msra.mxu0 0.0
    %1092 = vmatprep.subr.mxu0 0.0
    %1093 = vmatpush1.msra.mxu0 0.0
    %1094 = vmatprep.subr.mxu0 0.0
    %1095 = vmatpush1.msra.mxu0 %v1067
    %1096 = vmatprep.subr.mxu0 0.0
    %1097 = vmatpush1.msra.mxu0 %v1066
    %1098 = vmatprep.subr.mxu0 0.0
    %1099 = vmatpush1.msra.mxu0 %v1065
    %1100 = vmatprep.subr.mxu0 0.0
    %1101 = vmatpush1.msra.mxu0 %v1064
    %1102 = vmatprep.subr.mxu0 0.0
    %1103 = vmatpush1.msra.mxu0 %v1063
    %1104 = vmatprep.subr.mxu0 0.0
    %1105 = vmatpush1.msra.mxu0 %v1062
    %1106 = vmatprep.subr.mxu0 0.0
    %1107 = vmatpush1.msra.mxu0 %v1061
    %1108 = vmatprep.subr.mxu0 0.0
    %1109 = vmatpush1.msra.mxu0 %v1060
    %1110 = vmatprep.subr.mxu0 0.0
    %1111 = vmatpush2.msra.mxu0 0.0
    %1112 = vmatprep.subr.mxu0 0.0
    %1113 = vmatpush2.msra.mxu0 0.0
    %1114 = vmatprep.subr.mxu0 0.0
    %1115 = vmatpush2.msra.mxu0 0.0
    %1116 = vmatprep.subr.mxu0 0.0
    %1117 = vmatpush2.msra.mxu0 0.0
    %1118 = vmatprep.subr.mxu0 0.0
    %1119 = vmatpush2.msra.mxu0 0.0
    %1120 = vmatprep.subr.mxu0 0.0
    %1121 = vmatpush2.msra.mxu0 0.0
    %1122 = vmatprep.subr.mxu0 0.0
    %1123 = vmatpush2.msra.mxu0 0.0
    %1124 = vmatprep.subr.mxu0 0.0
    %1125 = vmatpush2.msra.mxu0 0.0
    %1126 = vmatprep.subr.mxu0 0.0
    %1127 = vmatpush2.msra.mxu0 0.0
    %1128 = vmatprep.subr.mxu0 0.0
    %1129 = vmatpush2.msra.mxu0 0.0
    %1130 = vmatprep.subr.mxu0 0.0
    %1131 = vmatpush2.msra.mxu0 0.0
    %1132 = vmatprep.subr.mxu0 0.0
    %1133 = vmatpush2.msra.mxu0 0.0
    %1134 = vmatprep.subr.mxu0 0.0
    %1135 = vmatpush2.msra.mxu0 0.0
    %1136 = vmatprep.subr.mxu0 0.0
    %1137 = vmatpush2.msra.mxu0 0.0
    %1138 = vmatprep.subr.mxu0 0.0
    %1139 = vmatpush2.msra.mxu0 0.0
    %1140 = vmatprep.subr.mxu0 0.0
    %1141 = vmatpush2.msra.mxu0 0.0
    %1142 = vmatprep.mubr.f32.mxu0 0.0
    %1143 = vmatmul.mubr.f32.gmra.mxu0 %v1076
    %v1144 = vpop.f32.mrf.mxu0
    %v1145 = vadd.f32 %v1073, %v1144
    %v1146 = vpop.f32.mrf.mxu0
    %1147 = vdwg.mxu0
    %vm1148 = vcmask 15360
    %1149 = vst.msk [vmem:[%s6] sm:$0xff] %vm1148, %v1145
    // Predicated region
    $region30: #{tpu_custom_call.1} parent=1 // pred_check
      _
    $region31: #{tpu_custom_call.1} parent=1 // pred_check_branch
      %1151 = sbr.rel (0) target = $region33
    $region32: #{tpu_custom_call.1} parent=1 // pred_region
      _
    $region33: #{tpu_custom_call.1} parent=1 // pred_fallthru
      _
    // Predicated region
    $region34: #{tpu_custom_call.1} parent=1 // pred_check
      _
    $region35: #{tpu_custom_call.1} parent=1 // pred_check_branch
      %1153 = sbr.rel (0) target = $region37
    $region36: #{tpu_custom_call.1} parent=1 // pred_region
      _
    $region37: #{tpu_custom_call.1} parent=1 // pred_fallthru
      _
    %1154 = vsyncpa [#allocation4], 1

</llo_original>
